<compile_context>
chip_gen: v7x
topology: tpu7x:2x2x1
jax: 0.10.0
libtpu: 0.0.40
codegen_flags: <defaults>
</compile_context>

<pallas_src>
import functools
import math

import jax
import jax.numpy as jnp
import numpy as np
from jax.experimental import pallas as pl
from jax.experimental.pallas import tpu as pltpu

LN_EPS = 1e-5


def _silu(v):
    return v * jax.nn.sigmoid(v)


def _round_up(a, b):
    return ((a + b - 1) // b) * b


def gram_kernel(beta_smem, xt_ref, w_ref, ln_w_ref, ln_b_ref, bias0_ref, out_ref,
                *, degree, strip):
    # xt_ref  : (D, TB)   feature-major input tile (batch on lanes), f32
    # w_ref   : (O, K)    fused weight [base_w | grams_w[:,:,1].T | ...], mxu dtype
    # ln_*    : (O, 1)    LayerNorm affine params (broadcast along lanes)
    # bias0   : (O, 1)    silu(1) * sum_l grams_w[l, :, 0]  (P_0 folded out)
    # out_ref : (O, TB)   lane-dense output tile, f32
    O, tb = out_ref.shape
    n_strips = tb // strip                      # static
    inv_o = 1.0 / O

    # Grid-step-invariant values: load once, reuse across strips.
    w = w_ref[...]                              # (O, K) in MXU dtype
    ln_w = ln_w_ref[...].astype(jnp.float32)
    ln_b = ln_b_ref[...].astype(jnp.float32)
    bias0 = bias0_ref[...].astype(jnp.float32)

    def strip_body(s, carry):
        j = pl.multiple_of(s * strip, strip)
        x = xt_ref[:, pl.ds(j, strip)].astype(jnp.float32)   # (D, strip)

        # --- base branch + Gram-polynomial branch as one (K, strip) slab ---
        feats = [_silu(x)]                      # SiLU(x) for the base linear branch
        if degree >= 1:
            t = jnp.tanh(x)
            p0 = jnp.ones_like(t)               # P_0: constant, folded into bias0
            p1 = t
            feats.append(_silu(p1))             # P_1 = tanh(x)
            for i in range(2, degree + 1):      # small static loop (degree == 3)
                p2 = t * p1 - beta_smem[i - 2] * p0
                feats.append(_silu(p2))
                p0, p1 = p1, p2

        f = jnp.concatenate(feats, axis=0).astype(w.dtype)   # (K, strip)

        # --- single MXU matmul per strip: (O, K) @ (K, strip) -> (O, strip) ---
        y = jnp.dot(w, f, preferred_element_type=jnp.float32) + bias0

        # --- LayerNorm over out_channels (sublane axis), single pass, then SiLU ---
        mean = jnp.sum(y, axis=0, keepdims=True) * inv_o
        ex2 = jnp.sum(y * y, axis=0, keepdims=True) * inv_o
        var = ex2 - mean * mean
        z = (y - mean) * jax.lax.rsqrt(var + LN_EPS)
        z = z * ln_w + ln_b
        out_ref[:, pl.ds(j, strip)] = _silu(z).astype(out_ref.dtype)
        return carry

    jax.lax.fori_loop(0, n_strips, strip_body, 0, unroll=True)


def gram_layer_t(xt, base_w, grams_w, beta_w, ln_w, ln_b, *, degree=3,
                 block_b=512, strip=128, mxu_dtype=jnp.bfloat16, min_grid=2):
    """Feature-major entry point: xt (D, B) -> (O, B).
    Stacked KAN layers should chain this directly (batch stays on lanes); the
    (B, D) transposes only happen once at the model boundary."""
    D, B = xt.shape
    O = base_w.shape[0]
    assert grams_w.shape == (D, O, degree + 1)
    assert strip % 128 == 0

    # beta(i-1, i) coefficients of the Gram recurrence (mirrors torch .beta()).
    if degree >= 2:
        betas = jnp.stack([
            ((m + n) * (m - n) * n ** 2 / (m ** 2 / (4.0 * n ** 2 - 1.0)))
            * beta_w[n]
            for i in range(2, degree + 1)
            for (n, m) in [(i - 1, i)]
        ]).astype(jnp.float32)
    else:
        betas = jnp.zeros((1,), jnp.float32)

    # Fused weight (O, K) with the constant-P_0 column block removed:
    #   [ base_w | grams_w[:,:,1].T | ... | grams_w[:,:,degree].T ],  K = D*(degree+1)
    w_blocks = [base_w] + [grams_w[:, :, d].T for d in range(1, degree + 1)]
    wc = jnp.concatenate(w_blocks, axis=1).astype(mxu_dtype)          # (O, K)
    K = D * (degree + 1)
    assert wc.shape == (O, K)

    # P_0 contribution: silu(1) * sum_l grams_w[l, o, 0]  -> per-channel bias.
    silu1 = jax.nn.silu(jnp.float32(1.0))
    bias0 = (silu1 * jnp.sum(grams_w[:, :, 0], axis=0)).reshape(O, 1).astype(jnp.float32)

    # Effective batch tile: as large as requested, but keep >= min_grid parallel
    # grid steps when the batch allows (v7x: 2 TensorCores on the parallel axis;
    # on v5e/v6e min_grid=1 would also be fine).
    bb = min(block_b, _round_up(B, strip))
    if bb > strip and -(-B // bb) < min_grid:
        bb = max(strip, _round_up(-(-B // min_grid), strip))
    bb = _round_up(bb, strip)
    n_tiles = -(-B // bb)
    B_pad = n_tiles * bb
    xt_p = jnp.pad(xt, ((0, 0), (0, B_pad - B)))                       # (D, B_pad)

    kernel = functools.partial(gram_kernel, degree=int(degree), strip=int(strip))

    out_t = pl.pallas_call(
        kernel,
        out_shape=jax.ShapeDtypeStruct((O, B_pad), xt.dtype),
        grid=(n_tiles,),
        in_specs=[
            pl.BlockSpec(memory_space=pltpu.SMEM),               # betas (tiny scalars)
            pl.BlockSpec((D, bb), lambda i: (0, i)),             # x^T tile
            pl.BlockSpec((O, K), lambda i: (0, 0)),              # fused weight (invariant)
            pl.BlockSpec((O, 1), lambda i: (0, 0)),              # LN weight
            pl.BlockSpec((O, 1), lambda i: (0, 0)),              # LN bias
            pl.BlockSpec((O, 1), lambda i: (0, 0)),              # folded P_0 bias
        ],
        out_specs=pl.BlockSpec((O, bb), lambda i: (0, i)),       # lane-dense (O, TB)
        compiler_params=pltpu.CompilerParams(
            dimension_semantics=("parallel",)),
    )(betas, xt_p, wc, ln_w.reshape(O, 1), ln_b.reshape(O, 1), bias0)

    return out_t[:, :B]


def gram_layer(x, base_w, grams_w, beta_w, ln_w, ln_b, *, degree=3,
               block_b=512, strip=128, mxu_dtype=jnp.bfloat16):
    """Module-interface wrapper: x (B, D) -> (B, O).  The two transposes here
    are boundary layout plumbing; stacked layers should use gram_layer_t."""
    out_t = gram_layer_t(x.T, base_w, grams_w, beta_w, ln_w, ln_b, degree=degree,
                         block_b=block_b, strip=strip, mxu_dtype=mxu_dtype)
    return out_t.T


def gram_reference(x, base_w, grams_w, beta_w, ln_w, ln_b, degree=3):
    silu = jax.nn.silu
    basis = silu(x) @ base_w.T
    t = jnp.tanh(x)
    p0 = jnp.ones_like(t)
    polys = [p0]
    if degree >= 1:
        p1 = t
        polys.append(p1)
        for i in range(2, degree + 1):
            n, m = i - 1, i
            b = (m + n) * (m - n) * n ** 2 / (m ** 2 / (4.0 * n ** 2 - 1.0)) * beta_w[n]
            p2 = t * p1 - b * p0
            polys.append(p2)
            p0, p1 = p1, p2
    gb = silu(jnp.stack(polys, axis=-1))                  # (B, D, degree+1)
    y = jnp.einsum('bld,lod->bo', gb, grams_w)
    z = y + basis
    mean = jnp.mean(z, axis=-1, keepdims=True)
    var = jnp.mean((z - mean) ** 2, axis=-1, keepdims=True)
    z = (z - mean) / jnp.sqrt(var + LN_EPS) * ln_w + ln_b
    return silu(z)


if __name__ == "__main__":
    # Module hyperparameters (GRAMLayer defaults: degree=3, act=SiLU).
    in_channels = 32
    out_channels = 32
    degree = 3
    batch = 512          # -> 2 "parallel" grid steps of 256 lanes (2 strips each)

    key = jax.random.PRNGKey(0)
    kx, kb, kg, kw = jax.random.split(key, 4)

    x = jax.random.normal(kx, (batch, in_channels), dtype=jnp.float32)

    # Parameters mirroring GRAMLayer.init_weights().
    beta_w = jax.random.normal(kb, (degree + 1,), dtype=jnp.float32) \
        * (1.0 / (in_channels * (degree + 1.0)))
    bound_g = math.sqrt(6.0 / ((in_channels + out_channels) * (degree + 1.0)))
    grams_w = jax.random.uniform(kg, (in_channels, out_channels, degree + 1),
                                 minval=-bound_g, maxval=bound_g, dtype=jnp.float32)
    bound_b = math.sqrt(6.0 / (in_channels + out_channels))
    base_w = jax.random.uniform(kw, (out_channels, in_channels),
                                minval=-bound_b, maxval=bound_b, dtype=jnp.float32)
    ln_w = jnp.ones((out_channels,), jnp.float32)     # LayerNorm affine init
    ln_b = jnp.zeros((out_channels,), jnp.float32)

    ref = gram_reference(x, base_w, grams_w, beta_w, ln_w, ln_b, degree)

    # 1) f32-MXU path: tight numerical check against the reference.
    out_f32 = gram_layer(x, base_w, grams_w, beta_w, ln_w, ln_b,
                         degree=degree, block_b=512, strip=128,
                         mxu_dtype=jnp.float32)
    out_f32 = jax.block_until_ready(out_f32)
    assert out_f32.shape == (batch, out_channels)
    np.testing.assert_allclose(np.asarray(out_f32), np.asarray(ref),
                               rtol=2e-5, atol=1e-4)

    # 2) bf16-MXU operands (v6e/v7x performance config, elementwise math stays f32).
    out_bf16 = gram_layer(x, base_w, grams_w, beta_w, ln_w, ln_b,
                          degree=degree, block_b=512, strip=128,
                          mxu_dtype=jnp.bfloat16)
    out_bf16 = jax.block_until_ready(out_bf16)
    np.testing.assert_allclose(np.asarray(out_bf16), np.asarray(ref),
                               rtol=2e-2, atol=2e-2)

    print("KERNEL_OK")
</pallas_src>

<mosaic_0001>
module attributes {stable_mosaic.version = 11 : i64} {
  func.func @gram_kernel(%arg0: i32, %arg1: memref<2xf32, #tpu.memory_space<smem>>, %arg2: memref<32x256xf32, #tpu.memory_space<vmem>>, %arg3: memref<32x128xf32, #tpu.memory_space<vmem>>, %arg4: memref<32x1xf32, #tpu.memory_space<vmem>>, %arg5: memref<32x1xf32, #tpu.memory_space<vmem>>, %arg6: memref<32x1xf32, #tpu.memory_space<vmem>>, %arg7: memref<32x256xf32, #tpu.memory_space<vmem>>) attributes {dimension_semantics = [#tpu.dimension_semantics<parallel>], iteration_bounds = array<i64: 2>, scalar_prefetch = 0 : i64, scratch_operands = 0 : i64, tpu.core_type = #tpu.core_type<tc>, window_params = [{transform_indices = @transform_0, window_bounds = array<i64: 2>}, {transform_indices = @transform_1, window_bounds = array<i64: 32, 256>}, {pipeline_mode = #tpu.pipeline_mode<synchronous>, transform_indices = @transform_2, window_bounds = array<i64: 32, 128>}, {pipeline_mode = #tpu.pipeline_mode<synchronous>, transform_indices = @transform_3, window_bounds = array<i64: 32, 1>}, {pipeline_mode = #tpu.pipeline_mode<synchronous>, transform_indices = @transform_4, window_bounds = array<i64: 32, 1>}, {pipeline_mode = #tpu.pipeline_mode<synchronous>, transform_indices = @transform_5, window_bounds = array<i64: 32, 1>}, {transform_indices = @transform_6, window_bounds = array<i64: 32, 256>}]} {
    %c0 = arith.constant 0 : index
    %c0_0 = arith.constant 0 : index
    %0 = vector.load %arg3[%c0, %c0_0] : memref<32x128xf32, #tpu.memory_space<vmem>>, vector<32x128xf32>
    %c0_1 = arith.constant 0 : index
    %c0_2 = arith.constant 0 : index
    %1 = vector.load %arg4[%c0_1, %c0_2] : memref<32x1xf32, #tpu.memory_space<vmem>>, vector<32x1xf32>
    %c0_3 = arith.constant 0 : index
    %c0_4 = arith.constant 0 : index
    %2 = vector.load %arg5[%c0_3, %c0_4] : memref<32x1xf32, #tpu.memory_space<vmem>>, vector<32x1xf32>
    %c0_5 = arith.constant 0 : index
    %c0_6 = arith.constant 0 : index
    %3 = vector.load %arg6[%c0_5, %c0_6] : memref<32x1xf32, #tpu.memory_space<vmem>>, vector<32x1xf32>
    %c0_i32 = arith.constant 0 : i32
    %c128_i32 = arith.constant 128 : i32
    %4 = arith.muli %c0_i32, %c128_i32 : i32
    %5 = tpu.assume_multiple %4, 128 : i32
    %c0_7 = arith.constant 0 : index
    %6 = arith.index_cast %5 : i32 to index
    %7 = vector.load %arg2[%c0_7, %6] : memref<32x256xf32, #tpu.memory_space<vmem>>, vector<32x128xf32>
    %8 = arith.negf %7 : vector<32x128xf32>
    %9 = math.exp %8 : vector<32x128xf32>
    %cst = arith.constant 1.000000e+00 : f32
    %10 = vector.broadcast %cst : f32 to vector<32x128xf32>
    %11 = arith.addf %10, %9 : vector<32x128xf32>
    %12 = arith.divf %10, %11 : vector<32x128xf32>
    %13 = arith.mulf %7, %12 : vector<32x128xf32>
    %14 = math.tanh %7 : vector<32x128xf32>
    %cst_8 = arith.constant 1.000000e+00 : f32
    %15 = vector.broadcast %cst_8 : f32 to vector<32x128xf32>
    %16 = arith.negf %14 : vector<32x128xf32>
    %17 = math.exp %16 : vector<32x128xf32>
    %cst_9 = arith.constant 1.000000e+00 : f32
    %18 = vector.broadcast %cst_9 : f32 to vector<32x128xf32>
    %19 = arith.addf %18, %17 : vector<32x128xf32>
    %20 = arith.divf %18, %19 : vector<32x128xf32>
    %21 = arith.mulf %14, %20 : vector<32x128xf32>
    %22 = arith.mulf %14, %14 : vector<32x128xf32>
    %c0_10 = arith.constant 0 : index
    %23 = memref.load %arg1[%c0_10] : memref<2xf32, #tpu.memory_space<smem>>
    %24 = vector.broadcast %23 : f32 to vector<32x128xf32>
    %25 = arith.mulf %24, %15 : vector<32x128xf32>
    %26 = arith.subf %22, %25 : vector<32x128xf32>
    %27 = arith.negf %26 : vector<32x128xf32>
    %28 = math.exp %27 : vector<32x128xf32>
    %cst_11 = arith.constant 1.000000e+00 : f32
    %29 = vector.broadcast %cst_11 : f32 to vector<32x128xf32>
    %30 = arith.addf %29, %28 : vector<32x128xf32>
    %31 = arith.divf %29, %30 : vector<32x128xf32>
    %32 = arith.mulf %26, %31 : vector<32x128xf32>
    %33 = arith.mulf %14, %26 : vector<32x128xf32>
    %c1 = arith.constant 1 : index
    %34 = memref.load %arg1[%c1] : memref<2xf32, #tpu.memory_space<smem>>
    %35 = vector.broadcast %34 : f32 to vector<32x128xf32>
    %36 = arith.mulf %35, %14 : vector<32x128xf32>
    %37 = arith.subf %33, %36 : vector<32x128xf32>
    %38 = arith.negf %37 : vector<32x128xf32>
    %39 = math.exp %38 : vector<32x128xf32>
    %cst_12 = arith.constant 1.000000e+00 : f32
    %40 = vector.broadcast %cst_12 : f32 to vector<32x128xf32>
    %41 = arith.addf %40, %39 : vector<32x128xf32>
    %42 = arith.divf %40, %41 : vector<32x128xf32>
    %43 = arith.mulf %37, %42 : vector<32x128xf32>
    %44 = tpu.concatenate %13, %21, %32, %43 in 0 : vector<32x128xf32>, vector<32x128xf32>, vector<32x128xf32>, vector<32x128xf32> -> vector<128x128xf32>
    %cst_13 = arith.constant dense<0.000000e+00> : vector<32x128xf32>
    %45 = tpu.matmul %0, %44, %cst_13 {dimension_numbers = #tpu.dot_dimension_numbers<[1], [0], [0], [1], [0, 0, 1, 1], [], []>} : vector<32x128xf32>, vector<128x128xf32>, vector<32x128xf32> -> vector<32x128xf32>
    %46 = vector.broadcast %3 : vector<32x1xf32> to vector<32x128xf32>
    %47 = arith.addf %45, %46 : vector<32x128xf32>
    %cst_14 = arith.constant dense<0.000000e+00> : vector<128xf32>
    %48 = vector.multi_reduction <add>, %47, %cst_14 [0] : vector<32x128xf32> to vector<128xf32>
    %49 = vector.shape_cast %48 : vector<128xf32> to vector<1x128xf32>
    %cst_15 = arith.constant 3.125000e-02 : f32
    %50 = vector.broadcast %cst_15 : f32 to vector<1x128xf32>
    %51 = arith.mulf %49, %50 : vector<1x128xf32>
    %52 = arith.mulf %47, %47 : vector<32x128xf32>
    %cst_16 = arith.constant dense<0.000000e+00> : vector<128xf32>
    %53 = vector.multi_reduction <add>, %52, %cst_16 [0] : vector<32x128xf32> to vector<128xf32>
    %54 = vector.shape_cast %53 : vector<128xf32> to vector<1x128xf32>
    %cst_17 = arith.constant 3.125000e-02 : f32
    %55 = vector.broadcast %cst_17 : f32 to vector<1x128xf32>
    %56 = arith.mulf %54, %55 : vector<1x128xf32>
    %57 = arith.mulf %51, %51 : vector<1x128xf32>
    %58 = arith.subf %56, %57 : vector<1x128xf32>
    %59 = vector.broadcast %51 : vector<1x128xf32> to vector<32x128xf32>
    %60 = arith.subf %47, %59 : vector<32x128xf32>
    %cst_18 = arith.constant 9.99999974E-6 : f32
    %61 = vector.broadcast %cst_18 : f32 to vector<1x128xf32>
    %62 = arith.addf %58, %61 : vector<1x128xf32>
    %63 = math.rsqrt %62 : vector<1x128xf32>
    %64 = vector.broadcast %63 : vector<1x128xf32> to vector<32x128xf32>
    %65 = arith.mulf %60, %64 : vector<32x128xf32>
    %66 = vector.broadcast %1 : vector<32x1xf32> to vector<32x128xf32>
    %67 = arith.mulf %65, %66 : vector<32x128xf32>
    %68 = vector.broadcast %2 : vector<32x1xf32> to vector<32x128xf32>
    %69 = arith.addf %67, %68 : vector<32x128xf32>
    %70 = arith.negf %69 : vector<32x128xf32>
    %71 = math.exp %70 : vector<32x128xf32>
    %cst_19 = arith.constant 1.000000e+00 : f32
    %72 = vector.broadcast %cst_19 : f32 to vector<32x128xf32>
    %73 = arith.addf %72, %71 : vector<32x128xf32>
    %74 = arith.divf %72, %73 : vector<32x128xf32>
    %75 = arith.mulf %69, %74 : vector<32x128xf32>
    %c0_20 = arith.constant 0 : index
    %76 = arith.index_cast %5 : i32 to index
    %77 = vector.load %arg7[%c0_20, %76] : memref<32x256xf32, #tpu.memory_space<vmem>>, vector<32x128xf32>
    tpu.vector_store %arg7[%c0_20, %76], %75 {strides = array<i32>} : memref<32x256xf32, #tpu.memory_space<vmem>>, vector<32x128xf32>,
    %c1_i32 = arith.constant 1 : i32
    %c128_i32_21 = arith.constant 128 : i32
    %78 = arith.muli %c1_i32, %c128_i32_21 : i32
    %79 = tpu.assume_multiple %78, 128 : i32
    %c0_22 = arith.constant 0 : index
    %80 = arith.index_cast %79 : i32 to index
    %81 = vector.load %arg2[%c0_22, %80] : memref<32x256xf32, #tpu.memory_space<vmem>>, vector<32x128xf32>
    %82 = arith.negf %81 : vector<32x128xf32>
    %83 = math.exp %82 : vector<32x128xf32>
    %cst_23 = arith.constant 1.000000e+00 : f32
    %84 = vector.broadcast %cst_23 : f32 to vector<32x128xf32>
    %85 = arith.addf %84, %83 : vector<32x128xf32>
    %86 = arith.divf %84, %85 : vector<32x128xf32>
    %87 = arith.mulf %81, %86 : vector<32x128xf32>
    %88 = math.tanh %81 : vector<32x128xf32>
    %cst_24 = arith.constant 1.000000e+00 : f32
    %89 = vector.broadcast %cst_24 : f32 to vector<32x128xf32>
    %90 = arith.negf %88 : vector<32x128xf32>
    %91 = math.exp %90 : vector<32x128xf32>
    %cst_25 = arith.constant 1.000000e+00 : f32
    %92 = vector.broadcast %cst_25 : f32 to vector<32x128xf32>
    %93 = arith.addf %92, %91 : vector<32x128xf32>
    %94 = arith.divf %92, %93 : vector<32x128xf32>
    %95 = arith.mulf %88, %94 : vector<32x128xf32>
    %96 = arith.mulf %88, %88 : vector<32x128xf32>
    %c0_26 = arith.constant 0 : index
    %97 = memref.load %arg1[%c0_26] : memref<2xf32, #tpu.memory_space<smem>>
    %98 = vector.broadcast %97 : f32 to vector<32x128xf32>
    %99 = arith.mulf %98, %89 : vector<32x128xf32>
    %100 = arith.subf %96, %99 : vector<32x128xf32>
    %101 = arith.negf %100 : vector<32x128xf32>
    %102 = math.exp %101 : vector<32x128xf32>
    %cst_27 = arith.constant 1.000000e+00 : f32
    %103 = vector.broadcast %cst_27 : f32 to vector<32x128xf32>
    %104 = arith.addf %103, %102 : vector<32x128xf32>
    %105 = arith.divf %103, %104 : vector<32x128xf32>
    %106 = arith.mulf %100, %105 : vector<32x128xf32>
    %107 = arith.mulf %88, %100 : vector<32x128xf32>
    %c1_28 = arith.constant 1 : index
    %108 = memref.load %arg1[%c1_28] : memref<2xf32, #tpu.memory_space<smem>>
    %109 = vector.broadcast %108 : f32 to vector<32x128xf32>
    %110 = arith.mulf %109, %88 : vector<32x128xf32>
    %111 = arith.subf %107, %110 : vector<32x128xf32>
    %112 = arith.negf %111 : vector<32x128xf32>
    %113 = math.exp %112 : vector<32x128xf32>
    %cst_29 = arith.constant 1.000000e+00 : f32
    %114 = vector.broadcast %cst_29 : f32 to vector<32x128xf32>
    %115 = arith.addf %114, %113 : vector<32x128xf32>
    %116 = arith.divf %114, %115 : vector<32x128xf32>
    %117 = arith.mulf %111, %116 : vector<32x128xf32>
    %118 = tpu.concatenate %87, %95, %106, %117 in 0 : vector<32x128xf32>, vector<32x128xf32>, vector<32x128xf32>, vector<32x128xf32> -> vector<128x128xf32>
    %cst_30 = arith.constant dense<0.000000e+00> : vector<32x128xf32>
    %119 = tpu.matmul %0, %118, %cst_30 {dimension_numbers = #tpu.dot_dimension_numbers<[1], [0], [0], [1], [0, 0, 1, 1], [], []>} : vector<32x128xf32>, vector<128x128xf32>, vector<32x128xf32> -> vector<32x128xf32>
    %120 = vector.broadcast %3 : vector<32x1xf32> to vector<32x128xf32>
    %121 = arith.addf %119, %120 : vector<32x128xf32>
    %cst_31 = arith.constant dense<0.000000e+00> : vector<128xf32>
    %122 = vector.multi_reduction <add>, %121, %cst_31 [0] : vector<32x128xf32> to vector<128xf32>
    %123 = vector.shape_cast %122 : vector<128xf32> to vector<1x128xf32>
    %cst_32 = arith.constant 3.125000e-02 : f32
    %124 = vector.broadcast %cst_32 : f32 to vector<1x128xf32>
    %125 = arith.mulf %123, %124 : vector<1x128xf32>
    %126 = arith.mulf %121, %121 : vector<32x128xf32>
    %cst_33 = arith.constant dense<0.000000e+00> : vector<128xf32>
    %127 = vector.multi_reduction <add>, %126, %cst_33 [0] : vector<32x128xf32> to vector<128xf32>
    %128 = vector.shape_cast %127 : vector<128xf32> to vector<1x128xf32>
    %cst_34 = arith.constant 3.125000e-02 : f32
    %129 = vector.broadcast %cst_34 : f32 to vector<1x128xf32>
    %130 = arith.mulf %128, %129 : vector<1x128xf32>
    %131 = arith.mulf %125, %125 : vector<1x128xf32>
    %132 = arith.subf %130, %131 : vector<1x128xf32>
    %133 = vector.broadcast %125 : vector<1x128xf32> to vector<32x128xf32>
    %134 = arith.subf %121, %133 : vector<32x128xf32>
    %cst_35 = arith.constant 9.99999974E-6 : f32
    %135 = vector.broadcast %cst_35 : f32 to vector<1x128xf32>
    %136 = arith.addf %132, %135 : vector<1x128xf32>
    %137 = math.rsqrt %136 : vector<1x128xf32>
    %138 = vector.broadcast %137 : vector<1x128xf32> to vector<32x128xf32>
    %139 = arith.mulf %134, %138 : vector<32x128xf32>
    %140 = vector.broadcast %1 : vector<32x1xf32> to vector<32x128xf32>
    %141 = arith.mulf %139, %140 : vector<32x128xf32>
    %142 = vector.broadcast %2 : vector<32x1xf32> to vector<32x128xf32>
    %143 = arith.addf %141, %142 : vector<32x128xf32>
    %144 = arith.negf %143 : vector<32x128xf32>
    %145 = math.exp %144 : vector<32x128xf32>
    %cst_36 = arith.constant 1.000000e+00 : f32
    %146 = vector.broadcast %cst_36 : f32 to vector<32x128xf32>
    %147 = arith.addf %146, %145 : vector<32x128xf32>
    %148 = arith.divf %146, %147 : vector<32x128xf32>
    %149 = arith.mulf %143, %148 : vector<32x128xf32>
    %c0_37 = arith.constant 0 : index
    %150 = arith.index_cast %79 : i32 to index
    %151 = vector.load %arg7[%c0_37, %150] : memref<32x256xf32, #tpu.memory_space<vmem>>, vector<32x128xf32>
    tpu.vector_store %arg7[%c0_37, %150], %149 {strides = array<i32>} : memref<32x256xf32, #tpu.memory_space<vmem>>, vector<32x128xf32>,
    %c2_i32 = arith.constant 2 : i32
    return
  }
  func.func @transform_0(%arg0: i32) -> i32 {
    %c0_i32 = arith.constant 0 : i32
    %c0_i32_0 = arith.constant 0 : i32
    return %c0_i32 : i32
  }
  func.func @transform_1(%arg0: i32) -> (i32, i32) {
    %c0_i32 = arith.constant 0 : i32
    %c0_i32_0 = arith.constant 0 : i32
    return %c0_i32, %arg0 : i32, i32
  }
  func.func @transform_2(%arg0: i32) -> (i32, i32) {
    %c0_i32 = arith.constant 0 : i32
    %c0_i32_0 = arith.constant 0 : i32
    %c0_i32_1 = arith.constant 0 : i32
    return %c0_i32, %c0_i32_0 : i32, i32
  }
  func.func @transform_3(%arg0: i32) -> (i32, i32) {
    %c0_i32 = arith.constant 0 : i32
    %c0_i32_0 = arith.constant 0 : i32
    %c0_i32_1 = arith.constant 0 : i32
    return %c0_i32, %c0_i32_0 : i32, i32
  }
  func.func @transform_4(%arg0: i32) -> (i32, i32) {
    %c0_i32 = arith.constant 0 : i32
    %c0_i32_0 = arith.constant 0 : i32
    %c0_i32_1 = arith.constant 0 : i32
    return %c0_i32, %c0_i32_0 : i32, i32
  }
  func.func @transform_5(%arg0: i32) -> (i32, i32) {
    %c0_i32 = arith.constant 0 : i32
    %c0_i32_0 = arith.constant 0 : i32
    %c0_i32_1 = arith.constant 0 : i32
    return %c0_i32, %c0_i32_0 : i32, i32
  }
  func.func @transform_6(%arg0: i32) -> (i32, i32) {
    %c0_i32 = arith.constant 0 : i32
    %c0_i32_0 = arith.constant 0 : i32
    return %c0_i32, %arg0 : i32, i32
  }
}

</mosaic_0001>

<llo_original>
// kernel: tpu_custom_call.1
$region0: #{tpu_custom_call.1}
  #allocation0 [shape = 'u32[]', space=smem, size = 0x4, offset = 0x4, fixed_abs, tag = 'smem constant byte address 0x4 - core index']
  #allocation1 [shape = 'u32[144,128]{1,0:T(1,128)}', space=vmem, size = 0x12000, scoped, tag = 'internal scratch']
  %s0 = inlined_call_operand.vmem [shape: f32[2], index: 0, kind: input, shape index: {}]
  %s1 = inlined_call_operand.hbm [shape: f32[32,512], index: 1, kind: input, shape index: {}]
  %s2 = inlined_call_operand.vmem [shape: f32[32,128], index: 2, kind: input, shape index: {}]
  %s3 = inlined_call_operand.vmem [shape: f32[32,1], index: 3, kind: input, shape index: {}]
  %s4 = inlined_call_operand.vmem [shape: f32[32,1], index: 4, kind: input, shape index: {}]
  %s5 = inlined_call_operand.vmem [shape: f32[32,1], index: 5, kind: input, shape index: {}]
  %s6 = inlined_call_operand.hbm [shape: f32[32,512], index: 6, kind: output, shape index: {}]
  %s7 = sld [smem:[#allocation0]]
  $region65: #{tpu_custom_call.1} parent=0
    _
  %s9 = ssub.s32 1, %s7
  %s10 = scalar_select 0, %s9, %s7
  $region1: #{tpu_custom_call.1} parent=0
    #allocation2 [shape = 'u8[512]{0}', space=smem, size = 0x200, scoped, tag = 'input window, operand 0, single buffered']
    #allocation3 [shape = 's32[2]{0}', space=sflag, size = 0x8, scoped, tag = 'scoped memory for tpu_custom_call.1']
    #allocation4 [shape = 's32[2]{0}', space=sflag, size = 0x8, scoped, tag = 'scoped memory for tpu_custom_call.1']
    #allocation5 [shape = 's32[2]{0}', space=sflag, size = 0x8, scoped, tag = 'scoped memory for tpu_custom_call.1']
    #allocation6 [shape = 'u8[65536]{0}', space=vmem, size = 0x10000, scoped, tag = 'input window, operand 1']
    #allocation7 [shape = 'u8[65536]{0}', space=vmem, size = 0x10000, scoped, tag = 'output window, operand 0']
    %11 = vsyncpa [#allocation5], 0
    %12 = vsyncpa [#allocation3], 0
    %s13 = scalar_lea.sflag [#allocation3], 1
    %14 = vsyncpa %s13, 0
    %15 = vsyncpa [#allocation4], 0
    %s16 = scalar_lea.sflag [#allocation4], 1
    %17 = vsyncpa %s16, 0
    loop: start=0, step=1, limit=4
    $region2: #{tpu_custom_call.1} parent=1 // loop_pre_header
      _
    $region3: #{tpu_custom_call.1} parent=1 // loop_header
      %s19 = sphi 0, %s23
      %p20 = scmp.ge.s32.totalorder %s19, 4
      %s27 = sphi 0, %s27
      %s29 = sphi 0, %s27
      %s30 = sphi 0, %s29
      %s44 = sphi 0, %s30
      %s50 = sphi 0, %s52
      %s53 = sphi 0, %s50
      %s54 = sphi 0, %s53
      %s70 = sphi 0, %s54
      %s74 = sphi 0, %s74
      %s76 = sphi 0, %s74
      %s77 = sphi 0, %s76
      %s91 = sphi 0, %s77
      %s95 = sphi 0, %s95
      %s97 = sphi 0, %s95
      %s98 = sphi 0, %s97
      %s112 = sphi 0, %s98
      %s116 = sphi 0, %s116
      %s118 = sphi 0, %s116
      %s119 = sphi 0, %s118
      %s133 = sphi 0, %s119
      %s137 = sphi 0, %s137
      %s139 = sphi 0, %s137
      %s140 = sphi 0, %s139
      %s154 = sphi 0, %s140
      %s160 = sphi 0, %s162
      %s163 = sphi 0, %s160
      %s164 = sphi 0, %s163
      %s180 = sphi 0, %s164
    $region4: #{tpu_custom_call.1} parent=1 // loop_header_branch
      %22 = sbr.rel (%p20) target = $region8
    $region5: #{tpu_custom_call.1} parent=1 // loop_body
      %s24 = ssub.s32 %s19, 1
      %s25 = ssub.s32 %s19, 2
      %s26 = sadd.s32 %s19, 1
      %s28 = sadd.s32 %s27, 1
      %p31 = scmp.eq.s32.totalorder %s19, 1
      %p32 = scmp.ne.s32.totalorder %s27, %s29
      %p33 = scmp.eq.s32.totalorder %s19, 0
      %p34 = por %p32, %p33
      %p35 = scmp.ne.s32.totalorder %s27, %s29
      %p36 = scmp.eq.s32.totalorder %s24, 1
      %p37 = por %p35, %p36
      %p38 = scmp.ne.s32.totalorder %s29, %s30
      %p39 = scmp.eq.s32.totalorder %s24, 0
      %p40 = por %p38, %p39
      %p41 = scmp.ne.s32.totalorder %s29, %s30
      %p42 = scmp.eq.s32.totalorder %s25, 1
      %p43 = por %p41, %p42
      %p45 = scmp.ne.s32.totalorder %s30, %s44
      %p46 = scmp.eq.s32.totalorder %s25, 0
      %p47 = por %p45, %p46
      %s48 = ssub.s32 %s19, %s26
      %p49 = scmp.eq.s32.totalorder %s48, 0
      %s51 = sadd.s32 %s50, 1
      %s52 = scalar_select %p49, %s50, %s51
      %p55 = pneg %p49
      %p56 = scmp.eq.s32.totalorder %s19, 1
      %p57 = por %p55, %p56
      %p58 = scmp.ne.s32.totalorder %s50, %s53
      %p59 = scmp.eq.s32.totalorder %s19, 0
      %p60 = por %p58, %p59
      %p61 = scmp.ne.s32.totalorder %s50, %s53
      %p62 = scmp.eq.s32.totalorder %s24, 1
      %p63 = por %p61, %p62
      %p64 = scmp.ne.s32.totalorder %s53, %s54
      %p65 = scmp.eq.s32.totalorder %s24, 0
      %p66 = por %p64, %p65
      %p67 = scmp.ne.s32.totalorder %s53, %s54
      %p68 = scmp.eq.s32.totalorder %s25, 1
      %p69 = por %p67, %p68
      %p71 = scmp.ne.s32.totalorder %s54, %s70
      %p72 = scmp.eq.s32.totalorder %s25, 0
      %p73 = por %p71, %p72
      %s75 = sadd.s32 %s74, 1
      %p78 = scmp.eq.s32.totalorder %s19, 1
      %p79 = scmp.ne.s32.totalorder %s74, %s76
      %p80 = scmp.eq.s32.totalorder %s19, 0
      %p81 = por %p79, %p80
      %p82 = scmp.ne.s32.totalorder %s74, %s76
      %p83 = scmp.eq.s32.totalorder %s24, 1
      %p84 = por %p82, %p83
      %p85 = scmp.ne.s32.totalorder %s76, %s77
      %p86 = scmp.eq.s32.totalorder %s24, 0
      %p87 = por %p85, %p86
      %p88 = scmp.ne.s32.totalorder %s76, %s77
      %p89 = scmp.eq.s32.totalorder %s25, 1
      %p90 = por %p88, %p89
      %p92 = scmp.ne.s32.totalorder %s77, %s91
      %p93 = scmp.eq.s32.totalorder %s25, 0
      %p94 = por %p92, %p93
      %s96 = sadd.s32 %s95, 1
      %p99 = scmp.eq.s32.totalorder %s19, 1
      %p100 = scmp.ne.s32.totalorder %s95, %s97
      %p101 = scmp.eq.s32.totalorder %s19, 0
      %p102 = por %p100, %p101
      %p103 = scmp.ne.s32.totalorder %s95, %s97
      %p104 = scmp.eq.s32.totalorder %s24, 1
      %p105 = por %p103, %p104
      %p106 = scmp.ne.s32.totalorder %s97, %s98
      %p107 = scmp.eq.s32.totalorder %s24, 0
      %p108 = por %p106, %p107
      %p109 = scmp.ne.s32.totalorder %s97, %s98
      %p110 = scmp.eq.s32.totalorder %s25, 1
      %p111 = por %p109, %p110
      %p113 = scmp.ne.s32.totalorder %s98, %s112
      %p114 = scmp.eq.s32.totalorder %s25, 0
      %p115 = por %p113, %p114
      %s117 = sadd.s32 %s116, 1
      %p120 = scmp.eq.s32.totalorder %s19, 1
      %p121 = scmp.ne.s32.totalorder %s116, %s118
      %p122 = scmp.eq.s32.totalorder %s19, 0
      %p123 = por %p121, %p122
      %p124 = scmp.ne.s32.totalorder %s116, %s118
      %p125 = scmp.eq.s32.totalorder %s24, 1
      %p126 = por %p124, %p125
      %p127 = scmp.ne.s32.totalorder %s118, %s119
      %p128 = scmp.eq.s32.totalorder %s24, 0
      %p129 = por %p127, %p128
      %p130 = scmp.ne.s32.totalorder %s118, %s119
      %p131 = scmp.eq.s32.totalorder %s25, 1
      %p132 = por %p130, %p131
      %p134 = scmp.ne.s32.totalorder %s119, %s133
      %p135 = scmp.eq.s32.totalorder %s25, 0
      %p136 = por %p134, %p135
      %s138 = sadd.s32 %s137, 1
      %p141 = scmp.eq.s32.totalorder %s19, 1
      %p142 = scmp.ne.s32.totalorder %s137, %s139
      %p143 = scmp.eq.s32.totalorder %s19, 0
      %p144 = por %p142, %p143
      %p145 = scmp.ne.s32.totalorder %s137, %s139
      %p146 = scmp.eq.s32.totalorder %s24, 1
      %p147 = por %p145, %p146
      %p148 = scmp.ne.s32.totalorder %s139, %s140
      %p149 = scmp.eq.s32.totalorder %s24, 0
      %p150 = por %p148, %p149
      %p151 = scmp.ne.s32.totalorder %s139, %s140
      %p152 = scmp.eq.s32.totalorder %s25, 1
      %p153 = por %p151, %p152
      %p155 = scmp.ne.s32.totalorder %s140, %s154
      %p156 = scmp.eq.s32.totalorder %s25, 0
      %p157 = por %p155, %p156
      %s158 = ssub.s32 %s19, %s26
      %p159 = scmp.eq.s32.totalorder %s158, 0
      %s161 = sadd.s32 %s160, 1
      %s162 = scalar_select %p159, %s160, %s161
      %p165 = pneg %p159
      %p166 = scmp.eq.s32.totalorder %s19, 1
      %p167 = por %p165, %p166
      %p168 = scmp.ne.s32.totalorder %s160, %s163
      %p169 = scmp.eq.s32.totalorder %s19, 0
      %p170 = por %p168, %p169
      %p171 = scmp.ne.s32.totalorder %s160, %s163
      %p172 = scmp.eq.s32.totalorder %s24, 1
      %p173 = por %p171, %p172
      %p174 = scmp.ne.s32.totalorder %s163, %s164
      %p175 = scmp.eq.s32.totalorder %s24, 0
      %p176 = por %p174, %p175
      %p177 = scmp.ne.s32.totalorder %s163, %s164
      %p178 = scmp.eq.s32.totalorder %s25, 1
      %p179 = por %p177, %p178
      %p181 = scmp.ne.s32.totalorder %s164, %s180
      %p182 = scmp.eq.s32.totalorder %s25, 0
      %p183 = por %p181, %p182
      %p184 = scmp.le.s32.totalorder 1, %s19
      %p185 = scmp.lt.s32.totalorder %s19, 3
      %p186 = pnand %p184, %p185
      %p187 = pneg %p186
      // Predicated region
      $region9: #{tpu_custom_call.1} parent=5 // pred_check
        _
      $region10: #{tpu_custom_call.1} parent=5 // pred_check_branch
        %189 = sbr.rel (%p186) target = $region12
      $region11: #{tpu_custom_call.1} parent=5 // pred_region
        %s190 = ssub.s32 %s19, 1
        // Predicated region
        $region13: #{tpu_custom_call.1} parent=11 // pred_check
          %p191 = pneg %p40
        $region14: #{tpu_custom_call.1} parent=11 // pred_check_branch
          %193 = sbr.rel (%p191) target = $region16
        $region15: #{tpu_custom_call.1} parent=11 // pred_region
          %s195 = ssub.s32 16, 16
          %196 = vsyncadd [#allocation5], %s195
          %s198 = sshll.u32 %s0, 4
          %s199 = int_to_ptr.vmem [resolvable:$true] %s198
          %201 = dma.vmem_to_smem %s199, 16, [#allocation2], [#allocation5]
        $region16: #{tpu_custom_call.1} parent=11 // pred_fallthru
          _
        // Predicated region
        $region17: #{tpu_custom_call.1} parent=11 // pred_check
          %p202 = pneg %p87
        $region18: #{tpu_custom_call.1} parent=11 // pred_check_branch
          %204 = sbr.rel (%p202) target = $region20
        $region19: #{tpu_custom_call.1} parent=11 // pred_region
          _
        $region20: #{tpu_custom_call.1} parent=11 // pred_fallthru
          _
        // Predicated region
        $region21: #{tpu_custom_call.1} parent=11 // pred_check
          %p205 = pneg %p108
        $region22: #{tpu_custom_call.1} parent=11 // pred_check_branch
          %207 = sbr.rel (%p205) target = $region24
        $region23: #{tpu_custom_call.1} parent=11 // pred_region
          _
        $region24: #{tpu_custom_call.1} parent=11 // pred_fallthru
          _
        // Predicated region
        $region25: #{tpu_custom_call.1} parent=11 // pred_check
          %p208 = pneg %p129
        $region26: #{tpu_custom_call.1} parent=11 // pred_check_branch
          %210 = sbr.rel (%p208) target = $region28
        $region27: #{tpu_custom_call.1} parent=11 // pred_region
          _
        $region28: #{tpu_custom_call.1} parent=11 // pred_fallthru
          _
        // Predicated region
        $region29: #{tpu_custom_call.1} parent=11 // pred_check
          %p211 = pneg %p150
        $region30: #{tpu_custom_call.1} parent=11 // pred_check_branch
          %213 = sbr.rel (%p211) target = $region32
        $region31: #{tpu_custom_call.1} parent=11 // pred_region
          _
        $region32: #{tpu_custom_call.1} parent=11 // pred_fallthru
          _
      $region12: #{tpu_custom_call.1} parent=5 // pred_fallthru
        _
      %p214 = scmp.lt.s32.totalorder %s19, 2
      // Predicated region
      $region33: #{tpu_custom_call.1} parent=5 // pred_check
        %p215 = pneg %p214
      $region34: #{tpu_custom_call.1} parent=5 // pred_check_branch
        %217 = sbr.rel (%p215) target = $region36
      $region35: #{tpu_custom_call.1} parent=5 // pred_region
        // Predicated region
        $region37: #{tpu_custom_call.1} parent=35 // pred_check
          %p218 = pneg %p60
        $region38: #{tpu_custom_call.1} parent=35 // pred_check_branch
          %220 = sbr.rel (%p218) target = $region40
        $region39: #{tpu_custom_call.1} parent=35 // pred_region
          %s221 = sand.u32 %s50, 1
          %s222 = scalar_lea.sflag [#allocation3], %s221
          %s223 = sand.u32 %s50, 1
          %s224 = smul.addr %s223, 64
          %s225 = scalar_lea.vmem [#allocation6], %s224
          %s226 = smul.u32 2, %s19
          %s228 = ssub.s32 1024, 1024
          %229 = vsyncadd %s222, %s228
          %s230 = smul.addr %s226, 128
          %s231 = scalar_lea.hbm %s1, %s230
          %s232 = sshll.u32 %s225, 4
          %s233 = int_to_ptr.vmem [resolvable:$true] %s232
          %238 = dma.hbm_to_vmem [thread:$0]  %s231, 1024, %s233, %s222, 512, 256, 16
        $region40: #{tpu_custom_call.1} parent=35 // pred_fallthru
          _
      $region36: #{tpu_custom_call.1} parent=5 // pred_fallthru
        _
      %p239 = scmp.le.s32.totalorder 1, %s19
      %p240 = scmp.lt.s32.totalorder %s19, 3
      %p241 = pnand %p239, %p240
      %p242 = pneg %p241
      // Predicated region
      $region41: #{tpu_custom_call.1} parent=5 // pred_check
        _
      $region42: #{tpu_custom_call.1} parent=5 // pred_check_branch
        %244 = sbr.rel (%p241) target = $region44
      $region43: #{tpu_custom_call.1} parent=5 // pred_region
        %s245 = ssub.s32 %s19, 1
        // Predicated region
        $region45: #{tpu_custom_call.1} parent=43 // pred_check
          %p246 = pneg %p40
        $region46: #{tpu_custom_call.1} parent=43 // pred_check_branch
          %248 = sbr.rel (%p246) target = $region48
        $region47: #{tpu_custom_call.1} parent=43 // pred_region
          %249 = dma.done [#allocation5], 16
        $region48: #{tpu_custom_call.1} parent=43 // pred_fallthru
          _
        %s250 = sand.u32 %s53, 1
        %s251 = scalar_lea.sflag [#allocation3], %s250
        %s252 = sand.u32 %s53, 1
        %s253 = smul.addr %s252, 64
        %s254 = scalar_lea.vmem [#allocation6], %s253
        // Predicated region
        $region49: #{tpu_custom_call.1} parent=43 // pred_check
          %p255 = pneg %p66
        $region50: #{tpu_custom_call.1} parent=43 // pred_check_branch
          %257 = sbr.rel (%p255) target = $region52
        $region51: #{tpu_custom_call.1} parent=43 // pred_region
          %258 = dma.done %s251, 1024
        $region52: #{tpu_custom_call.1} parent=43 // pred_fallthru
          _
        %259 = sfence
        %p260 = pneg %p40
        %p261 = pneg %p37
        %s262 = sand.u32 %s53, 1
        %s263 = scalar_lea.sflag [#allocation3], %s262
        %s264 = sand.u32 %s53, 1
        %s265 = smul.addr %s264, 64
        %s266 = scalar_lea.vmem [#allocation6], %s265
        %p267 = pneg %p66
        %p268 = pneg %p63
        %p269 = pneg %p87
        %p270 = pneg %p84
        %p271 = pneg %p108
        %p272 = pneg %p105
        %p273 = pneg %p129
        %p274 = pneg %p126
        %p275 = pneg %p150
        %p276 = pneg %p147
        %p277 = pneg %p176
        %p278 = pneg %p173
        %s279 = sand.u32 %s163, 1
        %s280 = scalar_lea.sflag [#allocation4], %s279
        %s281 = sand.u32 %s163, 1
        %s282 = smul.addr %s281, 64
        %s283 = scalar_lea.vmem [#allocation7], %s282
        %s284 = smul.u32 2, %s24
        %s285 = smul.u32 2, %s24
        %v286 = vld [vmem:[%s2] sm:$0xff]
        %v287 = vld [vmem:[%s2 + $0x8] sm:$0xff]
        %v288 = vld [vmem:[%s2 + $0x10] sm:$0xff]
        %v289 = vld [vmem:[%s2 + $0x18] sm:$0xff]
        %v290 = vld [vmem:[%s3] sm:$0xff]
        %v291 = vld [vmem:[%s3 + $0x8] sm:$0xff]
        %v292 = vld [vmem:[%s3 + $0x10] sm:$0xff]
        %v293 = vld [vmem:[%s3 + $0x18] sm:$0xff]
        %v294 = vld [vmem:[%s4] sm:$0xff]
        %v295 = vld [vmem:[%s4 + $0x8] sm:$0xff]
        %v296 = vld [vmem:[%s4 + $0x10] sm:$0xff]
        %v297 = vld [vmem:[%s4 + $0x18] sm:$0xff]
        %v298 = vld [vmem:[%s5] sm:$0xff]
        %v299 = vld [vmem:[%s5 + $0x8] sm:$0xff]
        %v300 = vld [vmem:[%s5 + $0x10] sm:$0xff]
        %v301 = vld [vmem:[%s5 + $0x18] sm:$0xff]
        %v302 = vld [vmem:[%s254] sm:$0xff]
        %v303 = vld [vmem:[%s254 + $0x10] sm:$0xff]
        %v304 = vld [vmem:[%s254 + $0x20] sm:$0xff]
        %v305 = vld [vmem:[%s254 + $0x30] sm:$0xff]
        %v306 = vxor.u32 %v302, 2147483648
        %v307 = vxor.u32 %v303, 2147483648
        %v308 = vxor.u32 %v304, 2147483648
        %v309 = vxor.u32 %v305, 2147483648
        %v310 = vmul.f32 %v306, 1.442695
        %v311 = vpow.pop %v310
        %v312 = vmul.f32 %v307, 1.442695
        %v313 = vpow.pop %v312
        %v314 = vmul.f32 %v308, 1.442695
        %v315 = vpow.pop %v314
        %v316 = vmul.f32 %v309, 1.442695
        %v317 = vpow.pop %v316
        %v318 = vadd.f32 %v311, 1.0
        %v319 = vadd.f32 %v313, 1.0
        %v320 = vadd.f32 %v315, 1.0
        %v321 = vadd.f32 %v317, 1.0
        %v322 = vrcp.pop %v318
        %v323 = vmul.f32 1.0, %v322
        %v324 = vrcp.pop %v319
        %v325 = vmul.f32 1.0, %v324
        %v326 = vrcp.pop %v320
        %v327 = vmul.f32 1.0, %v326
        %v328 = vrcp.pop %v321
        %v329 = vmul.f32 1.0, %v328
        %v330 = vmul.f32 %v302, %v323
        %v331 = vmul.f32 %v303, %v325
        %v332 = vmul.f32 %v304, %v327
        %v333 = vmul.f32 %v305, %v329
        %v334 = vtanh.pop %v302
        %v335 = vtanh.pop %v303
        %v336 = vtanh.pop %v304
        %v337 = vtanh.pop %v305
        %v338 = vxor.u32 %v334, 2147483648
        %v339 = vxor.u32 %v335, 2147483648
        %v340 = vxor.u32 %v336, 2147483648
        %v341 = vxor.u32 %v337, 2147483648
        %v342 = vmul.f32 %v338, 1.442695
        %v343 = vpow.pop %v342
        %v344 = vmul.f32 %v339, 1.442695
        %v345 = vpow.pop %v344
        %v346 = vmul.f32 %v340, 1.442695
        %v347 = vpow.pop %v346
        %v348 = vmul.f32 %v341, 1.442695
        %v349 = vpow.pop %v348
        %v350 = vadd.f32 %v343, 1.0
        %v351 = vadd.f32 %v345, 1.0
        %v352 = vadd.f32 %v347, 1.0
        %v353 = vadd.f32 %v349, 1.0
        %v354 = vrcp.pop %v350
        %v355 = vmul.f32 1.0, %v354
        %v356 = vrcp.pop %v351
        %v357 = vmul.f32 1.0, %v356
        %v358 = vrcp.pop %v352
        %v359 = vmul.f32 1.0, %v358
        %v360 = vrcp.pop %v353
        %v361 = vmul.f32 1.0, %v360
        %v362 = vmul.f32 %v334, %v355
        %v363 = vmul.f32 %v335, %v357
        %v364 = vmul.f32 %v336, %v359
        %v365 = vmul.f32 %v337, %v361
        %v366 = vmul.f32 %v334, %v334
        %v367 = vmul.f32 %v335, %v335
        %v368 = vmul.f32 %v336, %v336
        %v369 = vmul.f32 %v337, %v337
        %s370 = sld [smem:[#allocation2]]
        %v371 = vstv %s370
        %v372 = vsub.f32 %v366, %v371
        %v373 = vsub.f32 %v367, %v371
        %v374 = vsub.f32 %v368, %v371
        %v375 = vsub.f32 %v369, %v371
        %v376 = vxor.u32 %v372, 2147483648
        %v377 = vxor.u32 %v373, 2147483648
        %v378 = vxor.u32 %v374, 2147483648
        %v379 = vxor.u32 %v375, 2147483648
        %v380 = vmul.f32 %v376, 1.442695
        %v381 = vpow.pop %v380
        %v382 = vmul.f32 %v377, 1.442695
        %v383 = vpow.pop %v382
        %v384 = vmul.f32 %v378, 1.442695
        %v385 = vpow.pop %v384
        %v386 = vmul.f32 %v379, 1.442695
        %v387 = vpow.pop %v386
        %v388 = vadd.f32 %v381, 1.0
        %v389 = vadd.f32 %v383, 1.0
        %v390 = vadd.f32 %v385, 1.0
        %v391 = vadd.f32 %v387, 1.0
        %v392 = vrcp.pop %v388
        %v393 = vmul.f32 1.0, %v392
        %v394 = vrcp.pop %v389
        %v395 = vmul.f32 1.0, %v394
        %v396 = vrcp.pop %v390
        %v397 = vmul.f32 1.0, %v396
        %v398 = vrcp.pop %v391
        %v399 = vmul.f32 1.0, %v398
        %v400 = vmul.f32 %v372, %v393
        %v401 = vmul.f32 %v373, %v395
        %v402 = vmul.f32 %v374, %v397
        %v403 = vmul.f32 %v375, %v399
        %v404 = vmul.f32 %v334, %v372
        %v405 = vmul.f32 %v335, %v373
        %v406 = vmul.f32 %v336, %v374
        %v407 = vmul.f32 %v337, %v375
        %s408 = sld [smem:[#allocation2 + $0x1]]
        %v409 = vstv %s408
        %v410 = vmul.f32 %v409, %v334
        %v411 = vmul.f32 %v409, %v335
        %v412 = vmul.f32 %v409, %v336
        %v413 = vmul.f32 %v409, %v337
        %v414 = vsub.f32 %v404, %v410
        %v415 = vsub.f32 %v405, %v411
        %v416 = vsub.f32 %v406, %v412
        %v417 = vsub.f32 %v407, %v413
        %v418 = vxor.u32 %v414, 2147483648
        %v419 = vxor.u32 %v415, 2147483648
        %v420 = vxor.u32 %v416, 2147483648
        %v421 = vxor.u32 %v417, 2147483648
        %v422 = vmul.f32 %v418, 1.442695
        %v423 = vpow.pop %v422
        %v424 = vmul.f32 %v419, 1.442695
        %v425 = vpow.pop %v424
        %v426 = vmul.f32 %v420, 1.442695
        %v427 = vpow.pop %v426
        %v428 = vmul.f32 %v421, 1.442695
        %v429 = vpow.pop %v428
        %v430 = vadd.f32 %v423, 1.0
        %v431 = vadd.f32 %v425, 1.0
        %v432 = vadd.f32 %v427, 1.0
        %v433 = vadd.f32 %v429, 1.0
        %v434 = vrcp.pop %v430
        %v435 = vmul.f32 1.0, %v434
        %v436 = vrcp.pop %v431
        %v437 = vmul.f32 1.0, %v436
        %v438 = vrcp.pop %v432
        %v439 = vmul.f32 1.0, %v438
        %v440 = vrcp.pop %v433
        %v441 = vmul.f32 1.0, %v440
        %v442 = vmul.f32 %v414, %v435
        %v443 = vmul.f32 %v415, %v437
        %v444 = vmul.f32 %v416, %v439
        %v445 = vmul.f32 %v417, %v441
        %447 = vset.pattern.permute.xlu0 0
        %448 = vperm.xlu0 %447, %v298
        %v449 = vpop.permute.xlu0 %448
        %452 = vset.pattern.permute.xlu0 0
        %453 = vperm.xlu0 %452, %v299
        %v454 = vpop.permute.xlu0 %453
        %457 = vset.pattern.permute.xlu0 0
        %458 = vperm.xlu0 %457, %v300
        %v459 = vpop.permute.xlu0 %458
        %462 = vset.pattern.permute.xlu0 0
        %463 = vperm.xlu0 %462, %v301
        %v464 = vpop.permute.xlu0 %463
        %466 = vmatprep.subr.mxu0 0.0
        %467 = vmatpush1.msra.mxu0 %v330
        %468 = vmatprep.subr.mxu0 0.0
        %469 = vmatpush1.msra.mxu0 %v331
        %470 = vmatprep.subr.mxu0 0.0
        %471 = vmatpush1.msra.mxu0 %v332
        %472 = vmatprep.subr.mxu0 0.0
        %473 = vmatpush1.msra.mxu0 %v333
        %474 = vmatprep.subr.mxu0 0.0
        %475 = vmatpush1.msra.mxu0 %v362
        %476 = vmatprep.subr.mxu0 0.0
        %477 = vmatpush1.msra.mxu0 %v363
        %478 = vmatprep.subr.mxu0 0.0
        %479 = vmatpush1.msra.mxu0 %v364
        %480 = vmatprep.subr.mxu0 0.0
        %481 = vmatpush1.msra.mxu0 %v365
        %482 = vmatprep.subr.mxu0 0.0
        %483 = vmatpush1.msra.mxu0 %v400
        %484 = vmatprep.subr.mxu0 0.0
        %485 = vmatpush1.msra.mxu0 %v401
        %486 = vmatprep.subr.mxu0 0.0
        %487 = vmatpush1.msra.mxu0 %v402
        %488 = vmatprep.subr.mxu0 0.0
        %489 = vmatpush1.msra.mxu0 %v403
        %490 = vmatprep.subr.mxu0 0.0
        %491 = vmatpush1.msra.mxu0 %v442
        %492 = vmatprep.subr.mxu0 0.0
        %493 = vmatpush1.msra.mxu0 %v443
        %494 = vmatprep.subr.mxu0 0.0
        %495 = vmatpush1.msra.mxu0 %v444
        %496 = vmatprep.subr.mxu0 0.0
        %497 = vmatpush1.msra.mxu0 %v445
        %498 = vmatprep.subr.mxu0 0.0
        %499 = vmatpush1.msra.mxu0 0.0
        %500 = vmatprep.subr.mxu0 0.0
        %501 = vmatpush1.msra.mxu0 0.0
        %502 = vmatprep.subr.mxu0 0.0
        %503 = vmatpush1.msra.mxu0 0.0
        %504 = vmatprep.subr.mxu0 0.0
        %505 = vmatpush1.msra.mxu0 0.0
        %506 = vmatprep.subr.mxu0 0.0
        %507 = vmatpush1.msra.mxu0 0.0
        %508 = vmatprep.subr.mxu0 0.0
        %509 = vmatpush1.msra.mxu0 0.0
        %510 = vmatprep.subr.mxu0 0.0
        %511 = vmatpush1.msra.mxu0 0.0
        %512 = vmatprep.subr.mxu0 0.0
        %513 = vmatpush1.msra.mxu0 0.0
        %514 = vmatprep.subr.mxu0 0.0
        %515 = vmatpush1.msra.mxu0 0.0
        %516 = vmatprep.subr.mxu0 0.0
        %517 = vmatpush1.msra.mxu0 0.0
        %518 = vmatprep.subr.mxu0 0.0
        %519 = vmatpush1.msra.mxu0 0.0
        %520 = vmatprep.subr.mxu0 0.0
        %521 = vmatpush1.msra.mxu0 0.0
        %522 = vmatprep.subr.mxu0 0.0
        %523 = vmatpush1.msra.mxu0 0.0
        %524 = vmatprep.subr.mxu0 0.0
        %525 = vmatpush1.msra.mxu0 0.0
        %526 = vmatprep.subr.mxu0 0.0
        %527 = vmatpush1.msra.mxu0 0.0
        %528 = vmatprep.subr.mxu0 0.0
        %529 = vmatpush1.msra.mxu0 0.0
        %530 = vmatprep.mubr.f32.mxu0 0.0
        %531 = vmatmul.mubr.f32.gmra.mrb[0].mxu0 %v286
        %v532 = vpop.f32.mrb[0].mxu0
        %v533 = vadd.f32 %v449, %v532
        %v534 = vpop.f32.mrb[0].mxu0
        %535 = vmatprep.mubr.f32.mxu0 0.0
        %536 = vmatmul.mubr.f32.gmra.mrb[0].mxu0 %v287
        %v537 = vpop.f32.mrb[0].mxu0
        %v538 = vadd.f32 %v454, %v537
        %v539 = vpop.f32.mrb[0].mxu0
        %540 = vmatprep.mubr.f32.mxu0 0.0
        %541 = vmatmul.mubr.f32.gmra.mrb[0].mxu0 %v288
        %v542 = vpop.f32.mrb[0].mxu0
        %v543 = vadd.f32 %v459, %v542
        %v544 = vpop.f32.mrb[0].mxu0
        %545 = vmatprep.mubr.f32.mxu0 0.0
        %546 = vmatmul.mubr.f32.gmra.mrb[0].mxu0 %v289
        %v547 = vpop.f32.mrb[0].mxu0
        %v548 = vadd.f32 %v464, %v547
        %v549 = vpop.f32.mrb[0].mxu0
        %550 = vdwg.mxu0
        %v551 = vadd.f32 %v533, %v538
        %v552 = vadd.f32 %v551, %v543
        %v553 = vadd.f32 %v552, %v548
        %v554 = vrot.slane %v553, 4
        %v555 = vadd.f32 %v553, %v554
        %v556 = vrot.slane %v555, 2
        %v557 = vadd.f32 %v555, %v556
        %v558 = vrot.slane %v557, 1
        %v559 = vadd.f32 %v557, %v558
        %v560 = vmul.f32 %v559, 0.03125
        %v561 = vmul.f32 %v533, %v533
        %v562 = vmul.f32 %v538, %v538
        %v563 = vmul.f32 %v543, %v543
        %v564 = vmul.f32 %v548, %v548
        %v565 = vadd.f32 %v561, %v562
        %v566 = vadd.f32 %v565, %v563
        %v567 = vadd.f32 %v566, %v564
        %v568 = vrot.slane %v567, 4
        %v569 = vadd.f32 %v567, %v568
        %v570 = vrot.slane %v569, 2
        %v571 = vadd.f32 %v569, %v570
        %v572 = vrot.slane %v571, 1
        %v573 = vadd.f32 %v571, %v572
        %v574 = vmul.f32 %v573, 0.03125
        %v575 = vmul.f32 %v560, %v560
        %v576 = vsub.f32 %v574, %v575
        %v577 = vsub.f32 %v533, %v560
        %v578 = vsub.f32 %v538, %v560
        %v579 = vsub.f32 %v543, %v560
        %v580 = vsub.f32 %v548, %v560
        %v581 = vadd.f32 %v576, 1e-05
        %v582 = vrsqrt.pop %v581
        %v583 = vmul.f32 %v577, %v582
        %v584 = vmul.f32 %v578, %v582
        %v585 = vmul.f32 %v579, %v582
        %v586 = vmul.f32 %v580, %v582
        %588 = vset.pattern.permute.xlu0 0
        %589 = vperm.xlu0 %588, %v290
        %v590 = vpop.permute.xlu0 %589
        %593 = vset.pattern.permute.xlu0 0
        %594 = vperm.xlu0 %593, %v291
        %v595 = vpop.permute.xlu0 %594
        %598 = vset.pattern.permute.xlu0 0
        %599 = vperm.xlu0 %598, %v292
        %v600 = vpop.permute.xlu0 %599
        %603 = vset.pattern.permute.xlu0 0
        %604 = vperm.xlu0 %603, %v293
        %v605 = vpop.permute.xlu0 %604
        %v607 = vmul.f32 %v583, %v590
        %v608 = vmul.f32 %v584, %v595
        %v609 = vmul.f32 %v585, %v600
        %v610 = vmul.f32 %v586, %v605
        %612 = vset.pattern.permute.xlu0 0
        %613 = vperm.xlu0 %612, %v294
        %v614 = vpop.permute.xlu0 %613
        %617 = vset.pattern.permute.xlu0 0
        %618 = vperm.xlu0 %617, %v295
        %v619 = vpop.permute.xlu0 %618
        %622 = vset.pattern.permute.xlu0 0
        %623 = vperm.xlu0 %622, %v296
        %v624 = vpop.permute.xlu0 %623
        %627 = vset.pattern.permute.xlu0 0
        %628 = vperm.xlu0 %627, %v297
        %v629 = vpop.permute.xlu0 %628
        %v631 = vadd.f32 %v607, %v614
        %v632 = vadd.f32 %v608, %v619
        %v633 = vadd.f32 %v609, %v624
        %v634 = vadd.f32 %v610, %v629
        %v635 = vxor.u32 %v631, 2147483648
        %v636 = vxor.u32 %v632, 2147483648
        %v637 = vxor.u32 %v633, 2147483648
        %v638 = vxor.u32 %v634, 2147483648
        %v639 = vmul.f32 %v635, 1.442695
        %v640 = vpow.pop %v639
        %v641 = vmul.f32 %v636, 1.442695
        %v642 = vpow.pop %v641
        %v643 = vmul.f32 %v637, 1.442695
        %v644 = vpow.pop %v643
        %v645 = vmul.f32 %v638, 1.442695
        %v646 = vpow.pop %v645
        %v647 = vadd.f32 %v640, 1.0
        %v648 = vadd.f32 %v642, 1.0
        %v649 = vadd.f32 %v644, 1.0
        %v650 = vadd.f32 %v646, 1.0
        %v651 = vrcp.pop %v647
        %v652 = vmul.f32 1.0, %v651
        %v653 = vrcp.pop %v648
        %v654 = vmul.f32 1.0, %v653
        %v655 = vrcp.pop %v649
        %v656 = vmul.f32 1.0, %v655
        %v657 = vrcp.pop %v650
        %v658 = vmul.f32 1.0, %v657
        %v659 = vmul.f32 %v631, %v652
        %v660 = vmul.f32 %v632, %v654
        %v661 = vmul.f32 %v633, %v656
        %v662 = vmul.f32 %v634, %v658
        %663 = vst [vmem:[%s283] sm:$0xff] %v659
        %664 = vst [vmem:[%s283 + $0x10] sm:$0xff] %v660
        %665 = vst [vmem:[%s283 + $0x20] sm:$0xff] %v661
        %666 = vst [vmem:[%s283 + $0x30] sm:$0xff] %v662
        %s667 = scalar_lea.vmem %s254, 8 [#allocation6]
        %v668 = vld [vmem:[%s667] sm:$0xff]
        %v669 = vld [vmem:[%s667 + $0x10] sm:$0xff]
        %v670 = vld [vmem:[%s667 + $0x20] sm:$0xff]
        %v671 = vld [vmem:[%s667 + $0x30] sm:$0xff]
        %v672 = vxor.u32 %v668, 2147483648
        %v673 = vxor.u32 %v669, 2147483648
        %v674 = vxor.u32 %v670, 2147483648
        %v675 = vxor.u32 %v671, 2147483648
        %v676 = vmul.f32 %v672, 1.442695
        %v677 = vpow.pop %v676
        %v678 = vmul.f32 %v673, 1.442695
        %v679 = vpow.pop %v678
        %v680 = vmul.f32 %v674, 1.442695
        %v681 = vpow.pop %v680
        %v682 = vmul.f32 %v675, 1.442695
        %v683 = vpow.pop %v682
        %v684 = vadd.f32 %v677, 1.0
        %v685 = vadd.f32 %v679, 1.0
        %v686 = vadd.f32 %v681, 1.0
        %v687 = vadd.f32 %v683, 1.0
        %v688 = vrcp.pop %v684
        %v689 = vmul.f32 1.0, %v688
        %v690 = vrcp.pop %v685
        %v691 = vmul.f32 1.0, %v690
        %v692 = vrcp.pop %v686
        %v693 = vmul.f32 1.0, %v692
        %v694 = vrcp.pop %v687
        %v695 = vmul.f32 1.0, %v694
        %v696 = vmul.f32 %v668, %v689
        %v697 = vmul.f32 %v669, %v691
        %v698 = vmul.f32 %v670, %v693
        %v699 = vmul.f32 %v671, %v695
        %v700 = vtanh.pop %v668
        %v701 = vtanh.pop %v669
        %v702 = vtanh.pop %v670
        %v703 = vtanh.pop %v671
        %v704 = vxor.u32 %v700, 2147483648
        %v705 = vxor.u32 %v701, 2147483648
        %v706 = vxor.u32 %v702, 2147483648
        %v707 = vxor.u32 %v703, 2147483648
        %v708 = vmul.f32 %v704, 1.442695
        %v709 = vpow.pop %v708
        %v710 = vmul.f32 %v705, 1.442695
        %v711 = vpow.pop %v710
        %v712 = vmul.f32 %v706, 1.442695
        %v713 = vpow.pop %v712
        %v714 = vmul.f32 %v707, 1.442695
        %v715 = vpow.pop %v714
        %v716 = vadd.f32 %v709, 1.0
        %v717 = vadd.f32 %v711, 1.0
        %v718 = vadd.f32 %v713, 1.0
        %v719 = vadd.f32 %v715, 1.0
        %v720 = vrcp.pop %v716
        %v721 = vmul.f32 1.0, %v720
        %v722 = vrcp.pop %v717
        %v723 = vmul.f32 1.0, %v722
        %v724 = vrcp.pop %v718
        %v725 = vmul.f32 1.0, %v724
        %v726 = vrcp.pop %v719
        %v727 = vmul.f32 1.0, %v726
        %v728 = vmul.f32 %v700, %v721
        %v729 = vmul.f32 %v701, %v723
        %v730 = vmul.f32 %v702, %v725
        %v731 = vmul.f32 %v703, %v727
        %v732 = vmul.f32 %v700, %v700
        %v733 = vmul.f32 %v701, %v701
        %v734 = vmul.f32 %v702, %v702
        %v735 = vmul.f32 %v703, %v703
        %s736 = sld [smem:[#allocation2]]
        %v737 = vstv %s736
        %v738 = vsub.f32 %v732, %v737
        %v739 = vsub.f32 %v733, %v737
        %v740 = vsub.f32 %v734, %v737
        %v741 = vsub.f32 %v735, %v737
        %v742 = vxor.u32 %v738, 2147483648
        %v743 = vxor.u32 %v739, 2147483648
        %v744 = vxor.u32 %v740, 2147483648
        %v745 = vxor.u32 %v741, 2147483648
        %v746 = vmul.f32 %v742, 1.442695
        %v747 = vpow.pop %v746
        %v748 = vmul.f32 %v743, 1.442695
        %v749 = vpow.pop %v748
        %v750 = vmul.f32 %v744, 1.442695
        %v751 = vpow.pop %v750
        %v752 = vmul.f32 %v745, 1.442695
        %v753 = vpow.pop %v752
        %v754 = vadd.f32 %v747, 1.0
        %v755 = vadd.f32 %v749, 1.0
        %v756 = vadd.f32 %v751, 1.0
        %v757 = vadd.f32 %v753, 1.0
        %v758 = vrcp.pop %v754
        %v759 = vmul.f32 1.0, %v758
        %v760 = vrcp.pop %v755
        %v761 = vmul.f32 1.0, %v760
        %v762 = vrcp.pop %v756
        %v763 = vmul.f32 1.0, %v762
        %v764 = vrcp.pop %v757
        %v765 = vmul.f32 1.0, %v764
        %v766 = vmul.f32 %v738, %v759
        %v767 = vmul.f32 %v739, %v761
        %v768 = vmul.f32 %v740, %v763
        %v769 = vmul.f32 %v741, %v765
        %v770 = vmul.f32 %v700, %v738
        %v771 = vmul.f32 %v701, %v739
        %v772 = vmul.f32 %v702, %v740
        %v773 = vmul.f32 %v703, %v741
        %s774 = sld [smem:[#allocation2 + $0x1]]
        %v775 = vstv %s774
        %v776 = vmul.f32 %v775, %v700
        %v777 = vmul.f32 %v775, %v701
        %v778 = vmul.f32 %v775, %v702
        %v779 = vmul.f32 %v775, %v703
        %v780 = vsub.f32 %v770, %v776
        %v781 = vsub.f32 %v771, %v777
        %v782 = vsub.f32 %v772, %v778
        %v783 = vsub.f32 %v773, %v779
        %v784 = vxor.u32 %v780, 2147483648
        %v785 = vxor.u32 %v781, 2147483648
        %v786 = vxor.u32 %v782, 2147483648
        %v787 = vxor.u32 %v783, 2147483648
        %v788 = vmul.f32 %v784, 1.442695
        %v789 = vpow.pop %v788
        %v790 = vmul.f32 %v785, 1.442695
        %v791 = vpow.pop %v790
        %v792 = vmul.f32 %v786, 1.442695
        %v793 = vpow.pop %v792
        %v794 = vmul.f32 %v787, 1.442695
        %v795 = vpow.pop %v794
        %v796 = vadd.f32 %v789, 1.0
        %v797 = vadd.f32 %v791, 1.0
        %v798 = vadd.f32 %v793, 1.0
        %v799 = vadd.f32 %v795, 1.0
        %v800 = vrcp.pop %v796
        %v801 = vmul.f32 1.0, %v800
        %v802 = vrcp.pop %v797
        %v803 = vmul.f32 1.0, %v802
        %v804 = vrcp.pop %v798
        %v805 = vmul.f32 1.0, %v804
        %v806 = vrcp.pop %v799
        %v807 = vmul.f32 1.0, %v806
        %v808 = vmul.f32 %v780, %v801
        %v809 = vmul.f32 %v781, %v803
        %v810 = vmul.f32 %v782, %v805
        %v811 = vmul.f32 %v783, %v807
        %812 = vmatprep.subr.mxu0 0.0
        %813 = vmatpush1.msra.mxu0 %v696
        %814 = vmatprep.subr.mxu0 0.0
        %815 = vmatpush1.msra.mxu0 %v697
        %816 = vmatprep.subr.mxu0 0.0
        %817 = vmatpush1.msra.mxu0 %v698
        %818 = vmatprep.subr.mxu0 0.0
        %819 = vmatpush1.msra.mxu0 %v699
        %820 = vmatprep.subr.mxu0 0.0
        %821 = vmatpush1.msra.mxu0 %v728
        %822 = vmatprep.subr.mxu0 0.0
        %823 = vmatpush1.msra.mxu0 %v729
        %824 = vmatprep.subr.mxu0 0.0
        %825 = vmatpush1.msra.mxu0 %v730
        %826 = vmatprep.subr.mxu0 0.0
        %827 = vmatpush1.msra.mxu0 %v731
        %828 = vmatprep.subr.mxu0 0.0
        %829 = vmatpush1.msra.mxu0 %v766
        %830 = vmatprep.subr.mxu0 0.0
        %831 = vmatpush1.msra.mxu0 %v767
        %832 = vmatprep.subr.mxu0 0.0
        %833 = vmatpush1.msra.mxu0 %v768
        %834 = vmatprep.subr.mxu0 0.0
        %835 = vmatpush1.msra.mxu0 %v769
        %836 = vmatprep.subr.mxu0 0.0
        %837 = vmatpush1.msra.mxu0 %v808
        %838 = vmatprep.subr.mxu0 0.0
        %839 = vmatpush1.msra.mxu0 %v809
        %840 = vmatprep.subr.mxu0 0.0
        %841 = vmatpush1.msra.mxu0 %v810
        %842 = vmatprep.subr.mxu0 0.0
        %843 = vmatpush1.msra.mxu0 %v811
        %844 = vmatprep.subr.mxu0 0.0
        %845 = vmatpush1.msra.mxu0 0.0
        %846 = vmatprep.subr.mxu0 0.0
        %847 = vmatpush1.msra.mxu0 0.0
        %848 = vmatprep.subr.mxu0 0.0
        %849 = vmatpush1.msra.mxu0 0.0
        %850 = vmatprep.subr.mxu0 0.0
        %851 = vmatpush1.msra.mxu0 0.0
        %852 = vmatprep.subr.mxu0 0.0
        %853 = vmatpush1.msra.mxu0 0.0
        %854 = vmatprep.subr.mxu0 0.0
        %855 = vmatpush1.msra.mxu0 0.0
        %856 = vmatprep.subr.mxu0 0.0
        %857 = vmatpush1.msra.mxu0 0.0
        %858 = vmatprep.subr.mxu0 0.0
        %859 = vmatpush1.msra.mxu0 0.0
        %860 = vmatprep.subr.mxu0 0.0
        %861 = vmatpush1.msra.mxu0 0.0
        %862 = vmatprep.subr.mxu0 0.0
        %863 = vmatpush1.msra.mxu0 0.0
        %864 = vmatprep.subr.mxu0 0.0
        %865 = vmatpush1.msra.mxu0 0.0
        %866 = vmatprep.subr.mxu0 0.0
        %867 = vmatpush1.msra.mxu0 0.0
        %868 = vmatprep.subr.mxu0 0.0
        %869 = vmatpush1.msra.mxu0 0.0
        %870 = vmatprep.subr.mxu0 0.0
        %871 = vmatpush1.msra.mxu0 0.0
        %872 = vmatprep.subr.mxu0 0.0
        %873 = vmatpush1.msra.mxu0 0.0
        %874 = vmatprep.subr.mxu0 0.0
        %875 = vmatpush1.msra.mxu0 0.0
        %876 = vmatprep.mubr.f32.mxu0 0.0
        %877 = vmatmul.mubr.f32.gmra.mrb[0].mxu0 %v286
        %v878 = vpop.f32.mrb[0].mxu0
        %v879 = vadd.f32 %v449, %v878
        %v880 = vpop.f32.mrb[0].mxu0
        %881 = vmatprep.mubr.f32.mxu0 0.0
        %882 = vmatmul.mubr.f32.gmra.mrb[0].mxu0 %v287
        %v883 = vpop.f32.mrb[0].mxu0
        %v884 = vadd.f32 %v454, %v883
        %v885 = vpop.f32.mrb[0].mxu0
        %886 = vmatprep.mubr.f32.mxu0 0.0
        %887 = vmatmul.mubr.f32.gmra.mrb[0].mxu0 %v288
        %v888 = vpop.f32.mrb[0].mxu0
        %v889 = vadd.f32 %v459, %v888
        %v890 = vpop.f32.mrb[0].mxu0
        %891 = vmatprep.mubr.f32.mxu0 0.0
        %892 = vmatmul.mubr.f32.gmra.mrb[0].mxu0 %v289
        %v893 = vpop.f32.mrb[0].mxu0
        %v894 = vadd.f32 %v464, %v893
        %v895 = vpop.f32.mrb[0].mxu0
        %896 = vdwg.mxu0
        %v897 = vadd.f32 %v879, %v884
        %v898 = vadd.f32 %v897, %v889
        %v899 = vadd.f32 %v898, %v894
        %v900 = vrot.slane %v899, 4
        %v901 = vadd.f32 %v899, %v900
        %v902 = vrot.slane %v901, 2
        %v903 = vadd.f32 %v901, %v902
        %v904 = vrot.slane %v903, 1
        %v905 = vadd.f32 %v903, %v904
        %v906 = vmul.f32 %v905, 0.03125
        %v907 = vmul.f32 %v879, %v879
        %v908 = vmul.f32 %v884, %v884
        %v909 = vmul.f32 %v889, %v889
        %v910 = vmul.f32 %v894, %v894
        %v911 = vadd.f32 %v907, %v908
        %v912 = vadd.f32 %v911, %v909
        %v913 = vadd.f32 %v912, %v910
        %v914 = vrot.slane %v913, 4
        %v915 = vadd.f32 %v913, %v914
        %v916 = vrot.slane %v915, 2
        %v917 = vadd.f32 %v915, %v916
        %v918 = vrot.slane %v917, 1
        %v919 = vadd.f32 %v917, %v918
        %v920 = vmul.f32 %v919, 0.03125
        %v921 = vmul.f32 %v906, %v906
        %v922 = vsub.f32 %v920, %v921
        %v923 = vsub.f32 %v879, %v906
        %v924 = vsub.f32 %v884, %v906
        %v925 = vsub.f32 %v889, %v906
        %v926 = vsub.f32 %v894, %v906
        %v927 = vadd.f32 %v922, 1e-05
        %v928 = vrsqrt.pop %v927
        %v929 = vmul.f32 %v923, %v928
        %v930 = vmul.f32 %v924, %v928
        %v931 = vmul.f32 %v925, %v928
        %v932 = vmul.f32 %v926, %v928
        %v933 = vmul.f32 %v929, %v590
        %v934 = vmul.f32 %v930, %v595
        %v935 = vmul.f32 %v931, %v600
        %v936 = vmul.f32 %v932, %v605
        %v937 = vadd.f32 %v933, %v614
        %v938 = vadd.f32 %v934, %v619
        %v939 = vadd.f32 %v935, %v624
        %v940 = vadd.f32 %v936, %v629
        %v941 = vxor.u32 %v937, 2147483648
        %v942 = vxor.u32 %v938, 2147483648
        %v943 = vxor.u32 %v939, 2147483648
        %v944 = vxor.u32 %v940, 2147483648
        %v945 = vmul.f32 %v941, 1.442695
        %v946 = vpow.pop %v945
        %v947 = vmul.f32 %v942, 1.442695
        %v948 = vpow.pop %v947
        %v949 = vmul.f32 %v943, 1.442695
        %v950 = vpow.pop %v949
        %v951 = vmul.f32 %v944, 1.442695
        %v952 = vpow.pop %v951
        %v953 = vadd.f32 %v946, 1.0
        %v954 = vadd.f32 %v948, 1.0
        %v955 = vadd.f32 %v950, 1.0
        %v956 = vadd.f32 %v952, 1.0
        %v957 = vrcp.pop %v953
        %v958 = vmul.f32 1.0, %v957
        %v959 = vrcp.pop %v954
        %v960 = vmul.f32 1.0, %v959
        %v961 = vrcp.pop %v955
        %v962 = vmul.f32 1.0, %v961
        %v963 = vrcp.pop %v956
        %v964 = vmul.f32 1.0, %v963
        %v965 = vmul.f32 %v937, %v958
        %v966 = vmul.f32 %v938, %v960
        %v967 = vmul.f32 %v939, %v962
        %v968 = vmul.f32 %v940, %v964
        %s969 = scalar_lea.vmem %s283, 8 [#allocation7]
        %970 = vst [vmem:[%s969] sm:$0xff] %v965
        %971 = vst [vmem:[%s969 + $0x10] sm:$0xff] %v966
        %972 = vst [vmem:[%s969 + $0x20] sm:$0xff] %v967
        %973 = vst [vmem:[%s969 + $0x30] sm:$0xff] %v968
        %s974 = sand.u32 %s163, 1
        %s975 = scalar_lea.sflag [#allocation4], %s974
        %s976 = sand.u32 %s163, 1
        %s977 = smul.addr %s976, 64
        %s978 = scalar_lea.vmem [#allocation7], %s977
        // Predicated region
        $region53: #{tpu_custom_call.1} parent=43 // pred_check
          %p979 = pneg %p173
        $region54: #{tpu_custom_call.1} parent=43 // pred_check_branch
          %981 = sbr.rel (%p979) target = $region56
        $region55: #{tpu_custom_call.1} parent=43 // pred_region
          %s982 = smul.u32 2, %s24
          %s984 = ssub.s32 1024, 1024
          %985 = vsyncadd %s975, %s984
          %s986 = smul.addr %s982, 128
          %s987 = scalar_lea.hbm %s6, %s986
          %s988 = sshll.u32 %s978, 4
          %s989 = int_to_ptr.vmem [resolvable:$true] %s988
          %994 = dma.vmem_to_hbm [thread:$0]  %s989, 1024, %s987, %s975, 256, 512, 16
        $region56: #{tpu_custom_call.1} parent=43 // pred_fallthru
          _
      $region44: #{tpu_custom_call.1} parent=5 // pred_fallthru
        _
      %p995 = scmp.le.s32.totalorder 2, %s19
      // Predicated region
      $region57: #{tpu_custom_call.1} parent=5 // pred_check
        %p996 = pneg %p995
      $region58: #{tpu_custom_call.1} parent=5 // pred_check_branch
        %998 = sbr.rel (%p996) target = $region60
      $region59: #{tpu_custom_call.1} parent=5 // pred_region
        %s999 = ssub.s32 %s19, 2
        // Predicated region
        $region61: #{tpu_custom_call.1} parent=59 // pred_check
          %p1000 = pneg %p179
        $region62: #{tpu_custom_call.1} parent=59 // pred_check_branch
          %1002 = sbr.rel (%p1000) target = $region64
        $region63: #{tpu_custom_call.1} parent=59 // pred_region
          %s1003 = sand.u32 %s164, 1
          %s1004 = scalar_lea.sflag [#allocation4], %s1003
          %s1005 = sand.u32 %s164, 1
          %s1006 = smul.addr %s1005, 64
          %s1007 = scalar_lea.vmem [#allocation7], %s1006
          %1008 = dma.done %s1004, 1024
        $region64: #{tpu_custom_call.1} parent=59 // pred_fallthru
          _
      $region60: #{tpu_custom_call.1} parent=5 // pred_fallthru
        _
    $region6: #{tpu_custom_call.1} parent=1 // loop_footer
      %s23 = sadd.s32 1, %s19
    $region7: #{tpu_custom_call.1} parent=1 // loop_footer_branch
      %18 = sbr.rel target = $region3
    $region8: #{tpu_custom_call.1} parent=1 // loop_exit
      _
    %1009 = vsyncpa [#allocation3], 1
    %s1010 = scalar_lea.sflag [#allocation3], 1
    %1011 = vsyncpa %s1010, 1
    %1012 = vsyncpa [#allocation4], 1
    %s1013 = scalar_lea.sflag [#allocation4], 1
    %1014 = vsyncpa %s1013, 1
    %1015 = vsyncpa [#allocation5], 1
    %s1016 = scalar_lea.sflag [#allocation5], 1
    %1017 = vsyncpa %s1016, 1

</llo_original>
